<compile_context>
chip_gen: v7x
topology: tpu7x:2x2x1
jax: 0.10.0
libtpu: 0.0.40
codegen_flags: <defaults>
</compile_context>

<pallas_src>
import jax
import jax.numpy as jnp
from jax.experimental import pallas as pl
from jax.experimental.pallas import tpu as pltpu


def _rand_uniform_kernel(seed_ref, out_ref):
    # seed_ref: SMEM (1,) int32 seed; out_ref: VMEM (tile_rows, lane) float32 tile.
    i = pl.program_id(0)
    rows, lanes = out_ref.shape

    # Unique global element counter for this tile (uint32 wraparound is fine
    # for hashing purposes).
    row_ids = jax.lax.broadcasted_iota(jnp.int32, (rows, lanes), 0)
    col_ids = jax.lax.broadcasted_iota(jnp.int32, (rows, lanes), 1)
    ctr = ((i * rows + row_ids) * lanes + col_ids).astype(jnp.uint32)

    seed_u = seed_ref[0].astype(jnp.uint32)

    # Stateless counter-based hash: mix seed, then two murmur3-fmix32 rounds.
    z = ctr ^ (seed_u * jnp.uint32(0x9E3779B9) + jnp.uint32(0x7F4A7C15))
    z = z ^ (z >> 16)
    z = z * jnp.uint32(0x85EBCA6B)
    z = z ^ (z >> 13)
    z = z * jnp.uint32(0xC2B2AE35)
    z = z ^ (z >> 16)
    # Second round (different constants) to decorrelate structured counters.
    z = z ^ (z >> 15)
    z = z * jnp.uint32(0x2C1B3C6D)
    z = z ^ (z >> 12)
    z = z * jnp.uint32(0x297A2D39)
    z = z ^ (z >> 15)

    # Top 23 bits -> float32 mantissa, exponent for [1, 2), shift to [0, 1).
    mantissa = z >> 9
    fbits = mantissa | jnp.uint32(0x3F800000)
    out_ref[...] = jax.lax.bitcast_convert_type(fbits, jnp.float32) - jnp.float32(1.0)


def _slab_geometry(total):
    """Pick a lane-dense slab layout for `total` output elements."""
    # Large multiple of 128 lanes when the output is big; 128 otherwise.
    lane = 1024 if total >= 1024 * 8 else 128
    rows_needed = -(-total // lane)
    tile_rows = min(256, rows_needed)
    tile_rows = max(8, ((tile_rows + 7) // 8) * 8)          # multiple of 8 sublanes
    rows_padded = -(-rows_needed // tile_rows) * tile_rows   # multiple of tile_rows
    return lane, tile_rows, rows_padded


def random_identifier_encoder(x, d_model, seed=0):
    """JAX/Pallas equivalent of RandomIdentifierEncoder.forward.

    x: any array whose leading axis is the batch dimension (values unused).
    seed: callers should thread a fresh seed per call to mimic torch.rand's
          advancing global RNG state.
    Returns: float32 array of shape (x.shape[0], d_model), uniform in [0, 1).
    """
    batch = x.shape[0]
    total = batch * d_model
    lane, tile_rows, rows_padded = _slab_geometry(total)
    grid = (rows_padded // tile_rows,)

    seed_arr = jnp.asarray([seed], dtype=jnp.int32)

    slab = pl.pallas_call(
        _rand_uniform_kernel,
        out_shape=jax.ShapeDtypeStruct((rows_padded, lane), jnp.float32),
        grid=grid,
        in_specs=[pl.BlockSpec(memory_space=pltpu.MemorySpace.SMEM)],
        out_specs=pl.BlockSpec((tile_rows, lane), lambda i: (i, 0)),
        compiler_params=pltpu.CompilerParams(
            dimension_semantics=("parallel",),
        ),
    )(seed_arr)

    # Un-pad the lane-dense slab back to the module's (batch, d_model) view.
    return slab.reshape(-1)[:total].reshape(batch, d_model)


if __name__ == "__main__":
    key = jax.random.PRNGKey(0)
    # Small NCHW input consistent with a conv-style pipeline: batch=2, C=4, H=W=16.
    x = jax.random.normal(key, (2, 4, 16, 16), dtype=jnp.float32)
    d_model = 32

    out = random_identifier_encoder(x, d_model, seed=0)
    out = jax.block_until_ready(out)

    assert out.shape == (x.shape[0], d_model), out.shape
    assert out.dtype == jnp.float32, out.dtype
    assert bool(jnp.all(out >= 0.0)) and bool(jnp.all(out < 1.0)), "values not in [0,1)"
    assert float(jnp.std(out)) > 0.0, "values are degenerate (all identical)"

    print("KERNEL_OK")
</pallas_src>

<mosaic_0001>
module attributes {stable_mosaic.version = 11 : i64} {
  func.func @_rand_uniform_kernel(%arg0: i32, %arg1: memref<1xi32, #tpu.memory_space<smem>>, %arg2: memref<8x128xf32, #tpu.memory_space<vmem>>) attributes {dimension_semantics = [#tpu.dimension_semantics<parallel>], iteration_bounds = array<i64: 1>, scalar_prefetch = 0 : i64, scratch_operands = 0 : i64, tpu.core_type = #tpu.core_type<tc>, window_params = [{transform_indices = @transform_0, window_bounds = array<i64: 1>}, {transform_indices = @transform_1, window_bounds = array<i64: 8, 128>}]} {
    %0 = tpu.iota {dimensions = array<i32: 0>} : vector<8x128xi32>
    %1 = tpu.iota {dimensions = array<i32: 1>} : vector<8x128xi32>
    %c8_i32 = arith.constant 8 : i32
    %2 = arith.muli %arg0, %c8_i32 : i32
    %3 = vector.broadcast %2 : i32 to vector<8x128xi32>
    %4 = arith.addi %3, %0 : vector<8x128xi32>
    %c128_i32 = arith.constant 128 : i32
    %5 = vector.broadcast %c128_i32 : i32 to vector<8x128xi32>
    %6 = arith.muli %4, %5 : vector<8x128xi32>
    %7 = arith.addi %6, %1 : vector<8x128xi32>
    %c0 = arith.constant 0 : index
    %8 = memref.load %arg1[%c0] : memref<1xi32, #tpu.memory_space<smem>>
    %c-1640531527_i32 = arith.constant -1640531527 : i32
    %9 = arith.muli %8, %c-1640531527_i32 : i32
    %c2135587861_i32 = arith.constant 2135587861 : i32
    %10 = arith.addi %9, %c2135587861_i32 : i32
    %11 = vector.broadcast %10 : i32 to vector<8x128xi32>
    %12 = arith.xori %7, %11 : vector<8x128xi32>
    %c16_i32 = arith.constant 16 : i32
    %13 = vector.broadcast %c16_i32 : i32 to vector<8x128xi32>
    %14 = arith.shrui %12, %13 : vector<8x128xi32>
    %15 = arith.xori %12, %14 : vector<8x128xi32>
    %c-2048144789_i32 = arith.constant -2048144789 : i32
    %16 = vector.broadcast %c-2048144789_i32 : i32 to vector<8x128xi32>
    %17 = arith.muli %15, %16 : vector<8x128xi32>
    %c13_i32 = arith.constant 13 : i32
    %18 = vector.broadcast %c13_i32 : i32 to vector<8x128xi32>
    %19 = arith.shrui %17, %18 : vector<8x128xi32>
    %20 = arith.xori %17, %19 : vector<8x128xi32>
    %c-1028477387_i32 = arith.constant -1028477387 : i32
    %21 = vector.broadcast %c-1028477387_i32 : i32 to vector<8x128xi32>
    %22 = arith.muli %20, %21 : vector<8x128xi32>
    %c16_i32_0 = arith.constant 16 : i32
    %23 = vector.broadcast %c16_i32_0 : i32 to vector<8x128xi32>
    %24 = arith.shrui %22, %23 : vector<8x128xi32>
    %25 = arith.xori %22, %24 : vector<8x128xi32>
    %c15_i32 = arith.constant 15 : i32
    %26 = vector.broadcast %c15_i32 : i32 to vector<8x128xi32>
    %27 = arith.shrui %25, %26 : vector<8x128xi32>
    %28 = arith.xori %25, %27 : vector<8x128xi32>
    %c739982445_i32 = arith.constant 739982445 : i32
    %29 = vector.broadcast %c739982445_i32 : i32 to vector<8x128xi32>
    %30 = arith.muli %28, %29 : vector<8x128xi32>
    %c12_i32 = arith.constant 12 : i32
    %31 = vector.broadcast %c12_i32 : i32 to vector<8x128xi32>
    %32 = arith.shrui %30, %31 : vector<8x128xi32>
    %33 = arith.xori %30, %32 : vector<8x128xi32>
    %c695872825_i32 = arith.constant 695872825 : i32
    %34 = vector.broadcast %c695872825_i32 : i32 to vector<8x128xi32>
    %35 = arith.muli %33, %34 : vector<8x128xi32>
    %c15_i32_1 = arith.constant 15 : i32
    %36 = vector.broadcast %c15_i32_1 : i32 to vector<8x128xi32>
    %37 = arith.shrui %35, %36 : vector<8x128xi32>
    %38 = arith.xori %35, %37 : vector<8x128xi32>
    %c9_i32 = arith.constant 9 : i32
    %39 = vector.broadcast %c9_i32 : i32 to vector<8x128xi32>
    %40 = arith.shrui %38, %39 : vector<8x128xi32>
    %c1065353216_i32 = arith.constant 1065353216 : i32
    %41 = vector.broadcast %c1065353216_i32 : i32 to vector<8x128xi32>
    %42 = arith.ori %40, %41 : vector<8x128xi32>
    %43 = tpu.bitcast %42 : vector<8x128xi32> -> vector<8x128xf32>
    %cst = arith.constant 1.000000e+00 : f32
    %44 = vector.broadcast %cst : f32 to vector<8x128xf32>
    %45 = arith.subf %43, %44 : vector<8x128xf32>
    %c0_2 = arith.constant 0 : index
    %c0_3 = arith.constant 0 : index
    %46 = vector.load %arg2[%c0_2, %c0_3] : memref<8x128xf32, #tpu.memory_space<vmem>>, vector<8x128xf32>
    tpu.vector_store %arg2[%c0_2, %c0_3], %45 {strides = array<i32>} : memref<8x128xf32, #tpu.memory_space<vmem>>, vector<8x128xf32>,
    return
  }
  func.func @transform_0(%arg0: i32) -> i32 {
    %c0_i32 = arith.constant 0 : i32
    %c0_i32_0 = arith.constant 0 : i32
    return %c0_i32 : i32
  }
  func.func @transform_1(%arg0: i32) -> (i32, i32) {
    %c0_i32 = arith.constant 0 : i32
    %c0_i32_0 = arith.constant 0 : i32
    return %arg0, %c0_i32 : i32, i32
  }
}

</mosaic_0001>

<llo_original>
// kernel: tpu_custom_call.1
$region0: #{tpu_custom_call.1}
  #allocation0 [shape = 'u32[]', space=smem, size = 0x4, offset = 0x4, fixed_abs, tag = 'smem constant byte address 0x4 - core index']
  #allocation1 [shape = 'u32[144,128]{1,0:T(1,128)}', space=vmem, size = 0x12000, scoped, tag = 'internal scratch']
  #allocation2 [shape = 's32[1]{0:T(128)S(6)}', space=smem, size = 0x200, scoped, tag = 'scoped memory for tpu_custom_call.1']
  %s0 = inlined_call_operand.<no memory space> [shape: s32[1], index: 0, kind: input, shape index: {}]
  %s1 = inlined_call_operand.hbm [shape: f32[8,128], index: 1, kind: output, shape index: {}]
  %s2 = sld [smem:[#allocation0]]
  $region14: #{tpu_custom_call.1} parent=0
    _
  %s4 = ssub.s32 1, %s2
  %s5 = scalar_select 0, %s4, %s2
  %6 = sst [smem:[#allocation2]] %s0
  $region1: #{tpu_custom_call.1} parent=0
    #allocation3 [shape = 'u8[4096]{0}', space=vmem, size = 0x1000, scoped, tag = 'output window, operand 0, single buffered']
    #allocation4 [shape = 's32[1]{0}', space=sflag, size = 0x4, scoped, tag = 'scoped memory for tpu_custom_call.1']
    %7 = vsyncpa [#allocation4], 0
    // Predicated region
    $region2: #{tpu_custom_call.1} parent=1 // pred_check
      _
    $region3: #{tpu_custom_call.1} parent=1 // pred_check_branch
      %9 = sbr.rel (0) target = $region5
    $region4: #{tpu_custom_call.1} parent=1 // pred_region
      _
    $region5: #{tpu_custom_call.1} parent=1 // pred_fallthru
      _
    %v10 = vlaneseq
    %v11 = vshrl.u32 %v10, 7
    %v12 = vlaneseq
    %v13 = vand.u32 %v12, 127
    %s14 = smul.u32 0, 8
    %v15 = vstv %s14
    %v16 = vadd.s32 %v15, %v11
    %v17 = vmul.u32 %v16, 128
    %v18 = vadd.s32 %v17, %v13
    %s19 = sld [smem:[#allocation2]]
    %s20 = smul.u32 %s19, 2654435769
    %s21 = sadd.s32 %s20, 2135587861
    %v22 = vstv %s21
    %v23 = vxor.u32 %v18, %v22
    %v24 = vshrl.u32 %v23, 16
    %v25 = vxor.u32 %v23, %v24
    %v26 = vmul.u32 %v25, 2246822507
    %v27 = vshrl.u32 %v26, 13
    %v28 = vxor.u32 %v26, %v27
    %v29 = vmul.u32 %v28, 3266489909
    %v30 = vshrl.u32 %v29, 16
    %v31 = vxor.u32 %v29, %v30
    %v32 = vshrl.u32 %v31, 15
    %v33 = vxor.u32 %v31, %v32
    %v34 = vmul.u32 %v33, 739982445
    %v35 = vshrl.u32 %v34, 12
    %v36 = vxor.u32 %v34, %v35
    %v37 = vmul.u32 %v36, 695872825
    %v38 = vshrl.u32 %v37, 15
    %v39 = vxor.u32 %v37, %v38
    %v40 = vshrl.u32 %v39, 9
    %v41 = vor.u32 %v40, 1065353216
    %v43 = vsub.f32 %v41, 1.0
    %44 = vst [vmem:[#allocation3] sm:$0xff] %v43
    // Predicated region
    $region6: #{tpu_custom_call.1} parent=1 // pred_check
      _
    $region7: #{tpu_custom_call.1} parent=1 // pred_check_branch
      %46 = sbr.rel (0) target = $region9
    $region8: #{tpu_custom_call.1} parent=1 // pred_region
      %s48 = ssub.s32 128, 128
      %49 = vsyncadd [#allocation4], %s48
      %s51 = sshll.u32 [#allocation3], 4
      %s52 = int_to_ptr.vmem [resolvable:$true] %s51
      %54 = dma.vmem_to_hbm [thread:$0]  %s52, 128, %s1, [#allocation4]
    $region9: #{tpu_custom_call.1} parent=1 // pred_fallthru
      _
    // Predicated region
    $region10: #{tpu_custom_call.1} parent=1 // pred_check
      _
    $region11: #{tpu_custom_call.1} parent=1 // pred_check_branch
      %56 = sbr.rel (0) target = $region13
    $region12: #{tpu_custom_call.1} parent=1 // pred_region
      %57 = dma.done [#allocation4], 128
    $region13: #{tpu_custom_call.1} parent=1 // pred_fallthru
      _
    %58 = vsyncpa [#allocation4], 1

</llo_original>
